<compile_context>
chip_gen: v5e
topology: v5e:2x2
jax: 0.10.0
libtpu: 0.0.40
codegen_flags: <defaults>
</compile_context>

<pallas_src>
import functools

import jax
import jax.numpy as jnp
from jax.experimental import pallas as pl
from jax.experimental.pallas import tpu as pltpu

FEAT, FEAT_PAD = 3, 8          # pendulum obs (cos, sin, theta_dot), padded to 8
HIDDEN, HIDDEN_PAD = 100, 128  # hidden width, padded to a full lane width
N_HEADS = 2                    # column 0 = mu, column 1 = sigma


def _round_up(n, m):
    return (n + m - 1) // m * m


def actor_kernel(x_ref, w1_ref, b1_ref, wh_ref, bh_ref, out_ref):
    x = x_ref[...]                                          # (TB, 8) f32

    # Hidden layer: padded Linear(8 -> 128) + ReLU (MXU matmul, f32 accumulate).
    h = jnp.dot(x, w1_ref[...], preferred_element_type=jnp.float32) + b1_ref[...]
    h = jnp.maximum(h, 0.0)                                 # (TB, 128); pad units are 0

    # Fused heads: single (128, 2) matmul.  z[:, 0] -> mu, z[:, 1] -> sigma.
    z = jnp.dot(h, wh_ref[...], preferred_element_type=jnp.float32) + bh_ref[...]

    # Compute both activations on the whole (TB, 2) tile (EUP slot is free)
    # and select per column — avoids width-1 slices / relayouts.
    mu = 2.0 * jnp.tanh(z)
    sigma = jnp.maximum(z, 0.0) + jnp.log1p(jnp.exp(-jnp.abs(z)))  # stable softplus
    col = jax.lax.broadcasted_iota(jnp.int32, z.shape, 1)
    out_ref[...] = jnp.where(col == 0, mu, sigma)           # (TB, 2)


@functools.partial(jax.jit, static_argnames=("block_b",))
def actor_net_forward(x, packed_params, block_b=512):
    """x: (B, 3) float32.  packed_params from pack_params().  Returns (mu, sigma), each (B, 1)."""
    w1p, b1p, whp, bhp = packed_params
    B = x.shape[0]

    # Batch tile: 512 rows at realistic RL throughput, shrink for tiny batches.
    tb = min(block_b, _round_up(B, 8))
    b_pad = _round_up(B, tb)

    # Pad input once in the wrapper: (B, 3) -> (b_pad, 8), zero rows/cols.
    xp = jnp.zeros((b_pad, FEAT_PAD), x.dtype).at[:B, :FEAT].set(x)

    flops = 2 * b_pad * (FEAT_PAD * HIDDEN_PAD + HIDDEN_PAD * N_HEADS)
    bytes_accessed = 4 * (
        b_pad * FEAT_PAD                       # x
        + FEAT_PAD * HIDDEN_PAD + HIDDEN_PAD   # W1, b1
        + HIDDEN_PAD * N_HEADS + N_HEADS       # fused head W, b
        + b_pad * N_HEADS                      # output
    )

    out = pl.pallas_call(
        actor_kernel,
        out_shape=jax.ShapeDtypeStruct((b_pad, N_HEADS), jnp.float32),
        grid=(b_pad // tb,),
        in_specs=[
            pl.BlockSpec((tb, FEAT_PAD), lambda i: (i, 0)),          # x tiles along B
            pl.BlockSpec((FEAT_PAD, HIDDEN_PAD), lambda i: (0, 0)),  # W1  (VMEM-resident)
            pl.BlockSpec((1, HIDDEN_PAD), lambda i: (0, 0)),         # b1  (VMEM-resident)
            pl.BlockSpec((HIDDEN_PAD, N_HEADS), lambda i: (0, 0)),   # fused head W
            pl.BlockSpec((1, N_HEADS), lambda i: (0, 0)),            # fused head b
        ],
        out_specs=pl.BlockSpec((tb, N_HEADS), lambda i: (i, 0)),
        compiler_params=pltpu.CompilerParams(
            dimension_semantics=("parallel",),  # lets v7x shard batch tiles over 2 TCs
        ),
        cost_estimate=pl.CostEstimate(
            flops=flops,
            transcendentals=3 * b_pad * N_HEADS,
            bytes_accessed=bytes_accessed,
        ),
    )(xp, w1p, b1p, whp, bhp)

    mu = out[:B, 0:1]
    sigma = out[:B, 1:2]
    return mu, sigma


def init_params(key):
    """Raw (unpadded, unfused) params mimicking PyTorch Linear default init."""
    k1, k2, k3, k4, k5, k6 = jax.random.split(key, 6)

    def lin(kw, kb, fan_in, fan_out):
        bound = 1.0 / jnp.sqrt(fan_in)
        w = jax.random.uniform(kw, (fan_in, fan_out), jnp.float32, -bound, bound)
        b = jax.random.uniform(kb, (1, fan_out), jnp.float32, -bound, bound)
        return w, b

    w1, b1 = lin(k1, k2, FEAT, HIDDEN)    # fc:         Linear(3, 100)
    wmu, bmu = lin(k3, k4, HIDDEN, 1)     # mu_head:    Linear(100, 1)
    ws, bs = lin(k5, k6, HIDDEN, 1)       # sigma_head: Linear(100, 1)
    return (w1, b1, wmu, bmu, ws, bs)


def pack_params(raw):
    """Fuse the two heads and zero-pad everything to tile-aligned shapes (done once)."""
    w1, b1, wmu, bmu, ws, bs = raw
    w1p = jnp.zeros((FEAT_PAD, HIDDEN_PAD), jnp.float32).at[:FEAT, :HIDDEN].set(w1)
    b1p = jnp.zeros((1, HIDDEN_PAD), jnp.float32).at[:, :HIDDEN].set(b1)  # pad cols stay 0
    wh = jnp.concatenate([wmu, ws], axis=1)                               # (100, 2)
    whp = jnp.zeros((HIDDEN_PAD, N_HEADS), jnp.float32).at[:HIDDEN, :].set(wh)
    bhp = jnp.concatenate([bmu, bs], axis=1)                              # (1, 2)
    return (w1p, b1p, whp, bhp)


def reference_forward(x, raw):
    w1, b1, wmu, bmu, ws, bs = raw
    h = jax.nn.relu(x @ w1 + b1)
    mu = 2.0 * jnp.tanh(h @ wmu + bmu)
    sigma = jax.nn.softplus(h @ ws + bs)
    return mu, sigma


if __name__ == "__main__":
    key = jax.random.PRNGKey(0)
    kx, kp = jax.random.split(key)

    B = 8  # small batch of pendulum observations (cos theta, sin theta, theta_dot)
    x = jax.random.normal(kx, (B, FEAT), dtype=jnp.float32)

    raw_params = init_params(kp)
    packed_params = pack_params(raw_params)

    mu, sigma = actor_net_forward(x, packed_params)
    (mu, sigma) = jax.block_until_ready((mu, sigma))

    # sanity-check against pure-JAX reference on the raw (unpadded) params
    mu_ref, sigma_ref = reference_forward(x, raw_params)
    assert mu.shape == (B, 1) and sigma.shape == (B, 1)
    assert jnp.allclose(mu, mu_ref, atol=1e-5, rtol=1e-5), "mu mismatch"
    assert jnp.allclose(sigma, sigma_ref, atol=1e-5, rtol=1e-5), "sigma mismatch"

    print("KERNEL_OK")
</pallas_src>

<mosaic_0001>
module attributes {stable_mosaic.version = 11 : i64} {
  func.func @actor_kernel(%arg0: i32, %arg1: memref<8x8xf32, #tpu.memory_space<vmem>>, %arg2: memref<8x128xf32, #tpu.memory_space<vmem>>, %arg3: memref<1x128xf32, #tpu.memory_space<vmem>>, %arg4: memref<128x2xf32, #tpu.memory_space<vmem>>, %arg5: memref<1x2xf32, #tpu.memory_space<vmem>>, %arg6: memref<8x2xf32, #tpu.memory_space<vmem>>) attributes {dimension_semantics = [#tpu.dimension_semantics<parallel>], iteration_bounds = array<i64: 1>, scalar_prefetch = 0 : i64, scratch_operands = 0 : i64, tpu.core_type = #tpu.core_type<tc>, window_params = [{transform_indices = @transform_0, window_bounds = array<i64: 8, 8>}, {pipeline_mode = #tpu.pipeline_mode<synchronous>, transform_indices = @transform_1, window_bounds = array<i64: 8, 128>}, {pipeline_mode = #tpu.pipeline_mode<synchronous>, transform_indices = @transform_2, window_bounds = array<i64: 1, 128>}, {pipeline_mode = #tpu.pipeline_mode<synchronous>, transform_indices = @transform_3, window_bounds = array<i64: 128, 2>}, {pipeline_mode = #tpu.pipeline_mode<synchronous>, transform_indices = @transform_4, window_bounds = array<i64: 1, 2>}, {transform_indices = @transform_5, window_bounds = array<i64: 8, 2>}]} {
    %c0 = arith.constant 0 : index
    %c0_0 = arith.constant 0 : index
    %0 = vector.load %arg1[%c0, %c0_0] : memref<8x8xf32, #tpu.memory_space<vmem>>, vector<8x8xf32>
    %c0_1 = arith.constant 0 : index
    %c0_2 = arith.constant 0 : index
    %1 = vector.load %arg2[%c0_1, %c0_2] : memref<8x128xf32, #tpu.memory_space<vmem>>, vector<8x128xf32>
    %cst = arith.constant dense<0.000000e+00> : vector<8x128xf32>
    %2 = tpu.matmul %0, %1, %cst {dimension_numbers = #tpu.dot_dimension_numbers<[1], [0], [0], [1], [0, 0, 1, 1], [], []>} : vector<8x8xf32>, vector<8x128xf32>, vector<8x128xf32> -> vector<8x128xf32>
    %c0_3 = arith.constant 0 : index
    %c0_4 = arith.constant 0 : index
    %3 = vector.load %arg3[%c0_3, %c0_4] : memref<1x128xf32, #tpu.memory_space<vmem>>, vector<1x128xf32>
    %4 = vector.broadcast %3 : vector<1x128xf32> to vector<8x128xf32>
    %5 = arith.addf %2, %4 : vector<8x128xf32>
    %cst_5 = arith.constant 0.000000e+00 : f32
    %6 = vector.broadcast %cst_5 : f32 to vector<8x128xf32>
    %7 = arith.maximumf %5, %6 : vector<8x128xf32>
    %c0_6 = arith.constant 0 : index
    %c0_7 = arith.constant 0 : index
    %8 = vector.load %arg4[%c0_6, %c0_7] : memref<128x2xf32, #tpu.memory_space<vmem>>, vector<128x2xf32>
    %cst_8 = arith.constant dense<0.000000e+00> : vector<8x2xf32>
    %9 = tpu.matmul %7, %8, %cst_8 {dimension_numbers = #tpu.dot_dimension_numbers<[1], [0], [0], [1], [0, 0, 1, 1], [], []>} : vector<8x128xf32>, vector<128x2xf32>, vector<8x2xf32> -> vector<8x2xf32>
    %c0_9 = arith.constant 0 : index
    %c0_10 = arith.constant 0 : index
    %10 = vector.load %arg5[%c0_9, %c0_10] : memref<1x2xf32, #tpu.memory_space<vmem>>, vector<1x2xf32>
    %11 = vector.broadcast %10 : vector<1x2xf32> to vector<8x2xf32>
    %12 = arith.addf %9, %11 : vector<8x2xf32>
    %13 = math.tanh %12 : vector<8x2xf32>
    %cst_11 = arith.constant 2.000000e+00 : f32
    %14 = vector.broadcast %cst_11 : f32 to vector<8x2xf32>
    %15 = arith.mulf %14, %13 : vector<8x2xf32>
    %cst_12 = arith.constant 0.000000e+00 : f32
    %16 = vector.broadcast %cst_12 : f32 to vector<8x2xf32>
    %17 = arith.maximumf %12, %16 : vector<8x2xf32>
    %18 = math.absf %12 : vector<8x2xf32>
    %cst_13 = arith.constant 0.000000e+00 : f32
    %19 = vector.broadcast %cst_13 : f32 to vector<8x2xf32>
    %20 = arith.subf %19, %18 : vector<8x2xf32>
    %21 = math.exp %20 : vector<8x2xf32>
    %22 = math.log1p %21 : vector<8x2xf32>
    %23 = arith.addf %17, %22 : vector<8x2xf32>
    %24 = tpu.iota {dimensions = array<i32: 1>} : vector<8x2xi32>
    %c0_i32 = arith.constant 0 : i32
    %25 = vector.broadcast %c0_i32 : i32 to vector<8x2xi32>
    %26 = arith.cmpi eq, %24, %25 : vector<8x2xi32>
    %27 = arith.select %26, %15, %23 : vector<8x2xi1>, vector<8x2xf32>
    %c0_14 = arith.constant 0 : index
    %c0_15 = arith.constant 0 : index
    %28 = vector.load %arg6[%c0_14, %c0_15] : memref<8x2xf32, #tpu.memory_space<vmem>>, vector<8x2xf32>
    tpu.vector_store %arg6[%c0_14, %c0_15], %27 {strides = array<i32>} : memref<8x2xf32, #tpu.memory_space<vmem>>, vector<8x2xf32>,
    return
  }
  func.func @transform_0(%arg0: i32) -> (i32, i32) {
    %c0_i32 = arith.constant 0 : i32
    %c0_i32_0 = arith.constant 0 : i32
    return %arg0, %c0_i32 : i32, i32
  }
  func.func @transform_1(%arg0: i32) -> (i32, i32) {
    %c0_i32 = arith.constant 0 : i32
    %c0_i32_0 = arith.constant 0 : i32
    %c0_i32_1 = arith.constant 0 : i32
    return %c0_i32, %c0_i32_0 : i32, i32
  }
  func.func @transform_2(%arg0: i32) -> (i32, i32) {
    %c0_i32 = arith.constant 0 : i32
    %c0_i32_0 = arith.constant 0 : i32
    %c0_i32_1 = arith.constant 0 : i32
    return %c0_i32, %c0_i32_0 : i32, i32
  }
  func.func @transform_3(%arg0: i32) -> (i32, i32) {
    %c0_i32 = arith.constant 0 : i32
    %c0_i32_0 = arith.constant 0 : i32
    %c0_i32_1 = arith.constant 0 : i32
    return %c0_i32, %c0_i32_0 : i32, i32
  }
  func.func @transform_4(%arg0: i32) -> (i32, i32) {
    %c0_i32 = arith.constant 0 : i32
    %c0_i32_0 = arith.constant 0 : i32
    %c0_i32_1 = arith.constant 0 : i32
    return %c0_i32, %c0_i32_0 : i32, i32
  }
  func.func @transform_5(%arg0: i32) -> (i32, i32) {
    %c0_i32 = arith.constant 0 : i32
    %c0_i32_0 = arith.constant 0 : i32
    return %arg0, %c0_i32 : i32, i32
  }
}

</mosaic_0001>

<llo_original>
// kernel: actor_net_forward.1
$region0: #{actor_net_forward.1}
  #allocation0 [shape = 'u32[]', space=smem, size = 0x4, offset = 0x4, fixed_abs, tag = 'smem constant byte address 0x4 - core index']
  #allocation1 [shape = 'u32[72,128]{1,0:T(1,128)}', space=vmem, size = 0x9000, scoped, tag = 'internal scratch']
  %s0 = inlined_call_operand.vmem [shape: f32[8,8], index: 0, kind: input, shape index: {}]
  %s1 = inlined_call_operand.vmem [shape: f32[8,128], index: 1, kind: input, shape index: {}]
  %s2 = inlined_call_operand.vmem [shape: f32[1,128], index: 2, kind: input, shape index: {}]
  %s3 = inlined_call_operand.vmem [shape: f32[128,2], index: 3, kind: input, shape index: {}]
  %s4 = inlined_call_operand.vmem [shape: f32[1,2], index: 4, kind: input, shape index: {}]
  %s5 = inlined_call_operand.vmem [shape: f32[8,2], index: 5, kind: output, shape index: {}]
  %s6 = sld [smem:[#allocation0]]
  $region30: #{actor_net_forward.1} parent=0
    _
  %s8 = ssub.s32 1, %s6
  %s9 = scalar_select 0, %s8, %s6
  // Predicated region
  $region2: #{actor_net_forward.1} parent=0 // pred_check
    _
  $region3: #{actor_net_forward.1} parent=0 // pred_check_branch
    %11 = sbr.rel (0) target = $region5
  $region4: #{actor_net_forward.1} parent=0 // pred_region
    _
  $region5: #{actor_net_forward.1} parent=0 // pred_fallthru
    _
  // Predicated region
  $region6: #{actor_net_forward.1} parent=0 // pred_check
    _
  $region7: #{actor_net_forward.1} parent=0 // pred_check_branch
    %13 = sbr.rel (0) target = $region9
  $region8: #{actor_net_forward.1} parent=0 // pred_region
    _
  $region9: #{actor_net_forward.1} parent=0 // pred_fallthru
    _
  // Predicated region
  $region10: #{actor_net_forward.1} parent=0 // pred_check
    _
  $region11: #{actor_net_forward.1} parent=0 // pred_check_branch
    %15 = sbr.rel (0) target = $region13
  $region12: #{actor_net_forward.1} parent=0 // pred_region
    _
  $region13: #{actor_net_forward.1} parent=0 // pred_fallthru
    _
  // Predicated region
  $region14: #{actor_net_forward.1} parent=0 // pred_check
    _
  $region15: #{actor_net_forward.1} parent=0 // pred_check_branch
    %17 = sbr.rel (0) target = $region17
  $region16: #{actor_net_forward.1} parent=0 // pred_region
    _
  $region17: #{actor_net_forward.1} parent=0 // pred_fallthru
    _
  // Predicated region
  $region18: #{actor_net_forward.1} parent=0 // pred_check
    _
  $region19: #{actor_net_forward.1} parent=0 // pred_check_branch
    %19 = sbr.rel (0) target = $region21
  $region20: #{actor_net_forward.1} parent=0 // pred_region
    _
  $region21: #{actor_net_forward.1} parent=0 // pred_fallthru
    _
  %v20 = vld [vmem:[%s0] sm:$0xff]
  %v21 = vld [vmem:[%s1] sm:$0xff]
  %v22 = vld [vmem:[%s2] sm:$0x1]
  %v24 = vperm.slane %v22, 0
  %vm26 = vcmask 64512
  %v28 = vsel %vm26, %v20, 0
  %30 = vmatpush.msra.mxu0 0.0
  %31 = vmatpush.msra.mxu0 0.0
  %32 = vmatpush.msra.mxu0 0.0
  %33 = vmatpush.msra.mxu0 0.0
  %34 = vmatpush.msra.mxu0 0.0
  %35 = vmatpush.msra.mxu0 0.0
  %36 = vmatpush.msra.mxu0 0.0
  %37 = vmatpush.msra.mxu0 0.0
  %38 = vmatpush.msra.mxu0 0.0
  %39 = vmatpush.msra.mxu0 0.0
  %40 = vmatpush.msra.mxu0 0.0
  %41 = vmatpush.msra.mxu0 0.0
  %42 = vmatpush.msra.mxu0 0.0
  %43 = vmatpush.msra.mxu0 0.0
  %44 = vmatpush.msra.mxu0 0.0
  %45 = vmatpush.msra.mxu0 %v21
  %46 = vmatmul.f32.gmra.mxu0 %v28
  %v47 = vpop.f32.mrf.mxu0
  %v48 = vadd.f32 %v24, %v47
  %49 = vdwg.mxu0
  %v50 = vmax.f32 %v48, 0.0
  %v51 = vld [vmem:[%s3] sm:$0xff]
  %v52 = vld [vmem:[%s3 + $0x8] sm:$0xff]
  %v53 = vld [vmem:[%s3 + $0x10] sm:$0xff]
  %v54 = vld [vmem:[%s3 + $0x18] sm:$0xff]
  %v55 = vld [vmem:[%s3 + $0x20] sm:$0xff]
  %v56 = vld [vmem:[%s3 + $0x28] sm:$0xff]
  %v57 = vld [vmem:[%s3 + $0x30] sm:$0xff]
  %v58 = vld [vmem:[%s3 + $0x38] sm:$0xff]
  %v59 = vld [vmem:[%s3 + $0x40] sm:$0xff]
  %v60 = vld [vmem:[%s3 + $0x48] sm:$0xff]
  %v61 = vld [vmem:[%s3 + $0x50] sm:$0xff]
  %v62 = vld [vmem:[%s3 + $0x58] sm:$0xff]
  %v63 = vld [vmem:[%s3 + $0x60] sm:$0xff]
  %v64 = vld [vmem:[%s3 + $0x68] sm:$0xff]
  %v65 = vld [vmem:[%s3 + $0x70] sm:$0xff]
  %v66 = vld [vmem:[%s3 + $0x78] sm:$0xff]
  %v67 = vld [vmem:[%s4] sm:$0x1]
  %v69 = vperm.slane %v67, 0
  %71 = vmatpush.msra.mxu0 %v66
  %72 = vmatpush.msra.mxu0 %v65
  %73 = vmatpush.msra.mxu0 %v64
  %74 = vmatpush.msra.mxu0 %v63
  %75 = vmatpush.msra.mxu0 %v62
  %76 = vmatpush.msra.mxu0 %v61
  %77 = vmatpush.msra.mxu0 %v60
  %78 = vmatpush.msra.mxu0 %v59
  %79 = vmatpush.msra.mxu0 %v58
  %80 = vmatpush.msra.mxu0 %v57
  %81 = vmatpush.msra.mxu0 %v56
  %82 = vmatpush.msra.mxu0 %v55
  %83 = vmatpush.msra.mxu0 %v54
  %84 = vmatpush.msra.mxu0 %v53
  %85 = vmatpush.msra.mxu0 %v52
  %86 = vmatpush.msra.mxu0 %v51
  %87 = vmatmul.f32.gmra.mxu0 %v50
  %v88 = vpop.f32.mrf.mxu0
  %v89 = vadd.f32 %v69, %v88
  %90 = vdwg.mxu0
  %v91 = vtanh.pop %v89
  %v92 = vmul.f32 %v91, 2.0
  %v93 = vmax.f32 %v89, 0.0
  %v94 = vand.u32 2147483647, %v89
  %v95 = vsub.f32 0.0, %v94
  %v96 = vmul.f32 %v95, 1.442695
  %v97 = vpow.pop %v96
  %v98 = vadd.f32 %v97, 1.0
  %v99 = vlog2.pop %v98
  %v100 = vmul.f32 %v99, 0.6931472
  %v101 = vmul.f32 -0.5, %v97
  %v102 = vadd.f32 %v101, 1.0
  %v103 = vmul.f32 %v102, %v97
  %v104 = vand.u32 2147483647, %v97
  %vm105 = vcmp.lt.f32.partialorder %v104, 0.0004427343
  %v106 = vsel %vm105, %v103, %v100
  %v107 = vadd.f32 %v93, %v106
  %v108 = vlaneseq
  %v109 = vand.u32 %v108, 127
  %vm110 = vcmp.eq.s32.totalorder %v109, 0
  %v111 = vsel %vm110, %v92, %v107
  %vm112 = vcmask 15360
  %113 = vst.msk [vmem:[%s5] sm:$0xff] %vm112, %v111
  // Predicated region
  $region22: #{actor_net_forward.1} parent=0 // pred_check
    _
  $region23: #{actor_net_forward.1} parent=0 // pred_check_branch
    %115 = sbr.rel (0) target = $region25
  $region24: #{actor_net_forward.1} parent=0 // pred_region
    _
  $region25: #{actor_net_forward.1} parent=0 // pred_fallthru
    _
  // Predicated region
  $region26: #{actor_net_forward.1} parent=0 // pred_check
    _
  $region27: #{actor_net_forward.1} parent=0 // pred_check_branch
    %117 = sbr.rel (0) target = $region29
  $region28: #{actor_net_forward.1} parent=0 // pred_region
    _
  $region29: #{actor_net_forward.1} parent=0 // pred_fallthru
    _

</llo_original>
